<compile_context>
chip_gen: v7x
topology: tpu7x:2x2x1
jax: 0.10.0
libtpu: 0.0.40
codegen_flags: <defaults>
</compile_context>

<pallas_src>
import jax
import jax.numpy as jnp
from jax.experimental import pallas as pl
from jax.experimental.pallas import tpu as pltpu

_P = 128  # lane width / padded feature dim for every layer


def _round_up(n, m):
    return ((n + m - 1) // m) * m


def mlp_kernel(x_ref, p_ref, o_ref):
    # x_ref: (TB, 128) activations tile (features zero-padded past in_features)
    # p_ref: (4, 128, 128) parameter slab (W1, W2, W3, bias-rows)
    # o_ref: (TB, 128) lane-dense output tile (classes live in lanes 0..2)
    x = x_ref[...]
    b = p_ref[3]  # (128, 128); rows 0..2 hold b1, b2, b3 (zero-padded lanes)

    # fc1 + ReLU
    h = jnp.dot(x, p_ref[0], preferred_element_type=jnp.float32)
    h = jnp.maximum(h + b[0:1, :], 0.0)
    # fc2 + ReLU
    h = jnp.dot(h, p_ref[1], preferred_element_type=jnp.float32)
    h = jnp.maximum(h + b[1:2, :], 0.0)
    # out (no activation)
    y = jnp.dot(h, p_ref[2], preferred_element_type=jnp.float32)
    o_ref[...] = (y + b[2:3, :]).astype(o_ref.dtype)


def pack_params(w1, b1, w2, b2, w3, b3):
    """Pack all weights/biases into one zero-padded (4, 128, 128) f32 slab."""
    slab = jnp.zeros((4, _P, _P), jnp.float32)
    slab = slab.at[0, : w1.shape[0], : w1.shape[1]].set(w1.astype(jnp.float32))
    slab = slab.at[1, : w2.shape[0], : w2.shape[1]].set(w2.astype(jnp.float32))
    slab = slab.at[2, : w3.shape[0], : w3.shape[1]].set(w3.astype(jnp.float32))
    slab = slab.at[3, 0, : b1.shape[-1]].set(b1.reshape(-1).astype(jnp.float32))
    slab = slab.at[3, 1, : b2.shape[-1]].set(b2.reshape(-1).astype(jnp.float32))
    slab = slab.at[3, 2, : b3.shape[-1]].set(b3.reshape(-1).astype(jnp.float32))
    return slab


def mlp_forward(x, w1, b1, w2, b2, w3, b3, *, block_batch=1024):
    B, in_features = x.shape
    out_features = w3.shape[1]

    slab = pack_params(w1, b1, w2, b2, w3, b3)

    # Batch tiling: pad batch to a multiple of the (8-aligned) tile size.
    TB = min(block_batch, _round_up(B, 8))
    B_pad = _round_up(B, TB)
    x_pad = jnp.zeros((B_pad, _P), jnp.float32).at[:B, :in_features].set(
        x.astype(jnp.float32)
    )

    grid = (B_pad // TB,)
    cost = pl.CostEstimate(
        flops=2 * B_pad * _P * _P * 3,
        transcendentals=0,
        bytes_accessed=(x_pad.size + slab.size + B_pad * _P) * 4,
    )

    out = pl.pallas_call(
        mlp_kernel,
        out_shape=jax.ShapeDtypeStruct((B_pad, _P), jnp.float32),
        grid_spec=pltpu.PrefetchScalarGridSpec(
            num_scalar_prefetch=0,
            grid=grid,
            in_specs=[
                pl.BlockSpec((TB, _P), lambda i: (i, 0)),        # activations tile
                pl.BlockSpec((4, _P, _P), lambda i: (0, 0, 0)),  # resident params
            ],
            out_specs=pl.BlockSpec((TB, _P), lambda i: (i, 0)),
        ),
        compiler_params=pltpu.CompilerParams(
            dimension_semantics=("parallel",),
        ),
        cost_estimate=cost,
    )(x_pad, slab)

    return out[:B, :out_features]


def init_params(key, in_features=4, hidden1=8, hidden2=10, out_features=3):
    # Deterministic init matching PyTorch nn.Linear shape semantics
    # (kaiming-uniform-like bounds: U(-1/sqrt(fan_in), 1/sqrt(fan_in))).
    ks = jax.random.split(key, 6)

    def linear(kw, kb, fan_in, fan_out):
        bound = 1.0 / (fan_in ** 0.5)
        w = jax.random.uniform(kw, (fan_in, fan_out), jnp.float32, -bound, bound)
        b = jax.random.uniform(kb, (1, fan_out), jnp.float32, -bound, bound)
        return w, b

    w1, b1 = linear(ks[0], ks[1], in_features, hidden1)
    w2, b2 = linear(ks[2], ks[3], hidden1, hidden2)
    w3, b3 = linear(ks[4], ks[5], hidden2, out_features)
    return w1, b1, w2, b2, w3, b3


if __name__ == "__main__":
    key = jax.random.PRNGKey(0)
    kx, kp = jax.random.split(key)

    batch, in_features = 8, 4
    x = jax.random.normal(kx, (batch, in_features), dtype=jnp.float32)
    w1, b1, w2, b2, w3, b3 = init_params(kp, in_features=in_features)

    out = mlp_forward(x, w1, b1, w2, b2, w3, b3)
    out = jax.block_until_ready(out)

    # Reference check in plain JAX (same math as the PyTorch module).
    ref = jnp.maximum(x @ w1 + b1, 0.0)
    ref = jnp.maximum(ref @ w2 + b2, 0.0)
    ref = ref @ w3 + b3
    assert out.shape == (batch, 3)
    assert jnp.allclose(out, ref, atol=1e-5, rtol=1e-5)

    print("KERNEL_OK")
</pallas_src>

<mosaic_0001>
module attributes {stable_mosaic.version = 11 : i64} {
  func.func @mlp_kernel(%arg0: i32, %arg1: memref<8x128xf32, #tpu.memory_space<vmem>>, %arg2: memref<4x128x128xf32, #tpu.memory_space<vmem>>, %arg3: memref<8x128xf32, #tpu.memory_space<vmem>>) attributes {dimension_semantics = [#tpu.dimension_semantics<parallel>], iteration_bounds = array<i64: 1>, scalar_prefetch = 0 : i64, scratch_operands = 0 : i64, tpu.core_type = #tpu.core_type<tc>, window_params = [{transform_indices = @transform_0, window_bounds = array<i64: 8, 128>}, {pipeline_mode = #tpu.pipeline_mode<synchronous>, transform_indices = @transform_1, window_bounds = array<i64: 4, 128, 128>}, {transform_indices = @transform_2, window_bounds = array<i64: 8, 128>}]} {
    %c0 = arith.constant 0 : index
    %c0_0 = arith.constant 0 : index
    %0 = vector.load %arg1[%c0, %c0_0] : memref<8x128xf32, #tpu.memory_space<vmem>>, vector<8x128xf32>
    %c3 = arith.constant 3 : index
    %c0_1 = arith.constant 0 : index
    %c0_2 = arith.constant 0 : index
    %1 = vector.load %arg2[%c3, %c0_1, %c0_2] : memref<4x128x128xf32, #tpu.memory_space<vmem>>, vector<1x128x128xf32>
    %2 = vector.shape_cast %1 : vector<1x128x128xf32> to vector<128x128xf32>
    %c0_3 = arith.constant 0 : index
    %c0_4 = arith.constant 0 : index
    %c0_5 = arith.constant 0 : index
    %3 = vector.load %arg2[%c0_3, %c0_4, %c0_5] : memref<4x128x128xf32, #tpu.memory_space<vmem>>, vector<1x128x128xf32>
    %4 = vector.shape_cast %3 : vector<1x128x128xf32> to vector<128x128xf32>
    %cst = arith.constant dense<0.000000e+00> : vector<8x128xf32>
    %5 = tpu.matmul %0, %4, %cst {dimension_numbers = #tpu.dot_dimension_numbers<[1], [0], [0], [1], [0, 0, 1, 1], [], []>} : vector<8x128xf32>, vector<128x128xf32>, vector<8x128xf32> -> vector<8x128xf32>
    %6 = vector.extract_strided_slice %2 {offsets = [0, 0], sizes = [1, 128], strides = [1, 1]} : vector<128x128xf32> to vector<1x128xf32>
    %7 = vector.broadcast %6 : vector<1x128xf32> to vector<8x128xf32>
    %8 = arith.addf %5, %7 : vector<8x128xf32>
    %cst_6 = arith.constant 0.000000e+00 : f32
    %9 = vector.broadcast %cst_6 : f32 to vector<8x128xf32>
    %10 = arith.maximumf %8, %9 : vector<8x128xf32>
    %c1 = arith.constant 1 : index
    %c0_7 = arith.constant 0 : index
    %c0_8 = arith.constant 0 : index
    %11 = vector.load %arg2[%c1, %c0_7, %c0_8] : memref<4x128x128xf32, #tpu.memory_space<vmem>>, vector<1x128x128xf32>
    %12 = vector.shape_cast %11 : vector<1x128x128xf32> to vector<128x128xf32>
    %cst_9 = arith.constant dense<0.000000e+00> : vector<8x128xf32>
    %13 = tpu.matmul %10, %12, %cst_9 {dimension_numbers = #tpu.dot_dimension_numbers<[1], [0], [0], [1], [0, 0, 1, 1], [], []>} : vector<8x128xf32>, vector<128x128xf32>, vector<8x128xf32> -> vector<8x128xf32>
    %14 = vector.extract_strided_slice %2 {offsets = [1, 0], sizes = [1, 128], strides = [1, 1]} : vector<128x128xf32> to vector<1x128xf32>
    %15 = vector.broadcast %14 : vector<1x128xf32> to vector<8x128xf32>
    %16 = arith.addf %13, %15 : vector<8x128xf32>
    %cst_10 = arith.constant 0.000000e+00 : f32
    %17 = vector.broadcast %cst_10 : f32 to vector<8x128xf32>
    %18 = arith.maximumf %16, %17 : vector<8x128xf32>
    %c2 = arith.constant 2 : index
    %c0_11 = arith.constant 0 : index
    %c0_12 = arith.constant 0 : index
    %19 = vector.load %arg2[%c2, %c0_11, %c0_12] : memref<4x128x128xf32, #tpu.memory_space<vmem>>, vector<1x128x128xf32>
    %20 = vector.shape_cast %19 : vector<1x128x128xf32> to vector<128x128xf32>
    %cst_13 = arith.constant dense<0.000000e+00> : vector<8x128xf32>
    %21 = tpu.matmul %18, %20, %cst_13 {dimension_numbers = #tpu.dot_dimension_numbers<[1], [0], [0], [1], [0, 0, 1, 1], [], []>} : vector<8x128xf32>, vector<128x128xf32>, vector<8x128xf32> -> vector<8x128xf32>
    %22 = vector.extract_strided_slice %2 {offsets = [2, 0], sizes = [1, 128], strides = [1, 1]} : vector<128x128xf32> to vector<1x128xf32>
    %23 = vector.broadcast %22 : vector<1x128xf32> to vector<8x128xf32>
    %24 = arith.addf %21, %23 : vector<8x128xf32>
    %c0_14 = arith.constant 0 : index
    %c0_15 = arith.constant 0 : index
    %25 = vector.load %arg3[%c0_14, %c0_15] : memref<8x128xf32, #tpu.memory_space<vmem>>, vector<8x128xf32>
    tpu.vector_store %arg3[%c0_14, %c0_15], %24 {strides = array<i32>} : memref<8x128xf32, #tpu.memory_space<vmem>>, vector<8x128xf32>,
    return
  }
  func.func @transform_0(%arg0: i32) -> (i32, i32) {
    %c0_i32 = arith.constant 0 : i32
    %c0_i32_0 = arith.constant 0 : i32
    return %arg0, %c0_i32 : i32, i32
  }
  func.func @transform_1(%arg0: i32) -> (i32, i32, i32) {
    %c0_i32 = arith.constant 0 : i32
    %c0_i32_0 = arith.constant 0 : i32
    %c0_i32_1 = arith.constant 0 : i32
    %c0_i32_2 = arith.constant 0 : i32
    return %c0_i32, %c0_i32_0, %c0_i32_1 : i32, i32, i32
  }
  func.func @transform_2(%arg0: i32) -> (i32, i32) {
    %c0_i32 = arith.constant 0 : i32
    %c0_i32_0 = arith.constant 0 : i32
    return %arg0, %c0_i32 : i32, i32
  }
}

</mosaic_0001>

<llo_original>
// kernel: tpu_custom_call.1
$region0: #{tpu_custom_call.1}
  #allocation0 [shape = 'u32[]', space=smem, size = 0x4, offset = 0x4, fixed_abs, tag = 'smem constant byte address 0x4 - core index']
  #allocation1 [shape = 'u32[144,128]{1,0:T(1,128)}', space=vmem, size = 0x12000, scoped, tag = 'internal scratch']
  %s0 = inlined_call_operand.hbm [shape: f32[8,128], index: 0, kind: input, shape index: {}]
  %s1 = inlined_call_operand.hbm [shape: f32[4,128,128], index: 1, kind: input, shape index: {}]
  %s2 = inlined_call_operand.hbm [shape: f32[8,128], index: 2, kind: output, shape index: {}]
  %s3 = sld [smem:[#allocation0]]
  $region26: #{tpu_custom_call.1} parent=0
    _
  %s5 = ssub.s32 1, %s3
  %s6 = scalar_select 0, %s5, %s3
  $region1: #{tpu_custom_call.1} parent=0
    #allocation2 [shape = 'u8[4096]{0}', space=vmem, size = 0x1000, scoped, tag = 'input window, operand 0, single buffered']
    #allocation3 [shape = 's32[1]{0}', space=sflag, size = 0x4, scoped, tag = 'scoped memory for tpu_custom_call.1']
    #allocation4 [shape = 's32[1]{0}', space=sflag, size = 0x4, scoped, tag = 'scoped memory for tpu_custom_call.1']
    #allocation5 [shape = 'u8[262144]{0}', space=vmem, size = 0x40000, scoped, tag = 'input window, operand 1, single buffered']
    #allocation6 [shape = 's32[1]{0}', space=sflag, size = 0x4, scoped, tag = 'scoped memory for tpu_custom_call.1']
    #allocation7 [shape = 'u8[4096]{0}', space=vmem, size = 0x1000, scoped, tag = 'output window, operand 0, single buffered']
    %7 = vsyncpa [#allocation3], 0
    %8 = vsyncpa [#allocation6], 0
    %9 = vsyncpa [#allocation4], 0
    // Predicated region
    $region2: #{tpu_custom_call.1} parent=1 // pred_check
      _
    $region3: #{tpu_custom_call.1} parent=1 // pred_check_branch
      %11 = sbr.rel (0) target = $region5
    $region4: #{tpu_custom_call.1} parent=1 // pred_region
      %s13 = ssub.s32 128, 128
      %14 = vsyncadd [#allocation3], %s13
      %s16 = sshll.u32 [#allocation2], 4
      %s17 = int_to_ptr.vmem [resolvable:$true] %s16
      %19 = dma.hbm_to_vmem [thread:$0]  %s0, 128, %s17, [#allocation3]
    $region5: #{tpu_custom_call.1} parent=1 // pred_fallthru
      _
    // Predicated region
    $region6: #{tpu_custom_call.1} parent=1 // pred_check
      _
    $region7: #{tpu_custom_call.1} parent=1 // pred_check_branch
      %21 = sbr.rel (0) target = $region9
    $region8: #{tpu_custom_call.1} parent=1 // pred_region
      %s23 = ssub.s32 8192, 8192
      %24 = vsyncadd [#allocation6], %s23
      %s25 = sshll.u32 [#allocation5], 4
      %s26 = int_to_ptr.vmem [resolvable:$true] %s25
      %31 = dma.hbm_to_vmem [thread:$0]  %s1, 8192, %s26, [#allocation6], 128, 128, 8
    $region9: #{tpu_custom_call.1} parent=1 // pred_fallthru
      _
    // Predicated region
    $region10: #{tpu_custom_call.1} parent=1 // pred_check
      _
    $region11: #{tpu_custom_call.1} parent=1 // pred_check_branch
      %33 = sbr.rel (0) target = $region13
    $region12: #{tpu_custom_call.1} parent=1 // pred_region
      %34 = dma.done [#allocation3], 128
    $region13: #{tpu_custom_call.1} parent=1 // pred_fallthru
      _
    // Predicated region
    $region14: #{tpu_custom_call.1} parent=1 // pred_check
      _
    $region15: #{tpu_custom_call.1} parent=1 // pred_check_branch
      %36 = sbr.rel (0) target = $region17
    $region16: #{tpu_custom_call.1} parent=1 // pred_region
      %37 = dma.done [#allocation6], 8192
    $region17: #{tpu_custom_call.1} parent=1 // pred_fallthru
      _
    %v38 = vld [vmem:[#allocation2] sm:$0xff]
    %s39 = scalar_lea.vmem [#allocation5], 384
    %v40 = vld [vmem:[%s39] sm:$0xff]
    %v41 = vld [vmem:[#allocation5] sm:$0xff]
    %v42 = vld [vmem:[#allocation5 + $0x8] sm:$0xff]
    %v43 = vld [vmem:[#allocation5 + $0x10] sm:$0xff]
    %v44 = vld [vmem:[#allocation5 + $0x18] sm:$0xff]
    %v45 = vld [vmem:[#allocation5 + $0x20] sm:$0xff]
    %v46 = vld [vmem:[#allocation5 + $0x28] sm:$0xff]
    %v47 = vld [vmem:[#allocation5 + $0x30] sm:$0xff]
    %v48 = vld [vmem:[#allocation5 + $0x38] sm:$0xff]
    %v49 = vld [vmem:[#allocation5 + $0x40] sm:$0xff]
    %v50 = vld [vmem:[#allocation5 + $0x48] sm:$0xff]
    %v51 = vld [vmem:[#allocation5 + $0x50] sm:$0xff]
    %v52 = vld [vmem:[#allocation5 + $0x58] sm:$0xff]
    %v53 = vld [vmem:[#allocation5 + $0x60] sm:$0xff]
    %v54 = vld [vmem:[#allocation5 + $0x68] sm:$0xff]
    %v55 = vld [vmem:[#allocation5 + $0x70] sm:$0xff]
    %v56 = vld [vmem:[#allocation5 + $0x78] sm:$0xff]
    %v57 = vlaneseq
    %v58 = vshrl.u32 %v57, 7
    %v59 = vsub.s32 0, %v58
    %v60 = vrot.slane %v40, %v59
    %61 = vmatprep.subr.mxu0 0.0
    %62 = vmatpush1.msra.mxu0 %v41
    %63 = vmatprep.subr.mxu0 0.0
    %64 = vmatpush1.msra.mxu0 %v42
    %65 = vmatprep.subr.mxu0 0.0
    %66 = vmatpush1.msra.mxu0 %v43
    %67 = vmatprep.subr.mxu0 0.0
    %68 = vmatpush1.msra.mxu0 %v44
    %69 = vmatprep.subr.mxu0 0.0
    %70 = vmatpush1.msra.mxu0 %v45
    %71 = vmatprep.subr.mxu0 0.0
    %72 = vmatpush1.msra.mxu0 %v46
    %73 = vmatprep.subr.mxu0 0.0
    %74 = vmatpush1.msra.mxu0 %v47
    %75 = vmatprep.subr.mxu0 0.0
    %76 = vmatpush1.msra.mxu0 %v48
    %77 = vmatprep.subr.mxu0 0.0
    %78 = vmatpush1.msra.mxu0 %v49
    %79 = vmatprep.subr.mxu0 0.0
    %80 = vmatpush1.msra.mxu0 %v50
    %81 = vmatprep.subr.mxu0 0.0
    %82 = vmatpush1.msra.mxu0 %v51
    %83 = vmatprep.subr.mxu0 0.0
    %84 = vmatpush1.msra.mxu0 %v52
    %85 = vmatprep.subr.mxu0 0.0
    %86 = vmatpush1.msra.mxu0 %v53
    %87 = vmatprep.subr.mxu0 0.0
    %88 = vmatpush1.msra.mxu0 %v54
    %89 = vmatprep.subr.mxu0 0.0
    %90 = vmatpush1.msra.mxu0 %v55
    %91 = vmatprep.subr.mxu0 0.0
    %92 = vmatpush1.msra.mxu0 %v56
    %93 = vmatprep.subr.mxu0 0.0
    %94 = vmatpush1.msra.mxu0 0.0
    %95 = vmatprep.subr.mxu0 0.0
    %96 = vmatpush1.msra.mxu0 0.0
    %97 = vmatprep.subr.mxu0 0.0
    %98 = vmatpush1.msra.mxu0 0.0
    %99 = vmatprep.subr.mxu0 0.0
    %100 = vmatpush1.msra.mxu0 0.0
    %101 = vmatprep.subr.mxu0 0.0
    %102 = vmatpush1.msra.mxu0 0.0
    %103 = vmatprep.subr.mxu0 0.0
    %104 = vmatpush1.msra.mxu0 0.0
    %105 = vmatprep.subr.mxu0 0.0
    %106 = vmatpush1.msra.mxu0 0.0
    %107 = vmatprep.subr.mxu0 0.0
    %108 = vmatpush1.msra.mxu0 0.0
    %109 = vmatprep.subr.mxu0 0.0
    %110 = vmatpush1.msra.mxu0 0.0
    %111 = vmatprep.subr.mxu0 0.0
    %112 = vmatpush1.msra.mxu0 0.0
    %113 = vmatprep.subr.mxu0 0.0
    %114 = vmatpush1.msra.mxu0 0.0
    %115 = vmatprep.subr.mxu0 0.0
    %116 = vmatpush1.msra.mxu0 0.0
    %117 = vmatprep.subr.mxu0 0.0
    %118 = vmatpush1.msra.mxu0 0.0
    %119 = vmatprep.subr.mxu0 0.0
    %120 = vmatpush1.msra.mxu0 0.0
    %121 = vmatprep.subr.mxu0 0.0
    %122 = vmatpush1.msra.mxu0 0.0
    %123 = vmatprep.subr.mxu0 0.0
    %124 = vmatpush1.msra.mxu0 0.0
    %125 = vmatprep.mubr.f32.mxu0 0.0
    %126 = vmatmul.mubr.f32.gmra.mrb[0].mxu0 %v38
    %v127 = vpop.f32.mrb[0].mxu0
    %v128 = vadd.f32 %v60, %v127
    %v129 = vpop.f32.mrb[0].mxu0
    %130 = vdwg.mxu0
    %v131 = vmax.f32 %v128, 0.0
    %s132 = scalar_lea.vmem [#allocation5], 128
    %v133 = vld [vmem:[%s132] sm:$0xff]
    %v134 = vld [vmem:[%s132 + $0x8] sm:$0xff]
    %v135 = vld [vmem:[%s132 + $0x10] sm:$0xff]
    %v136 = vld [vmem:[%s132 + $0x18] sm:$0xff]
    %v137 = vld [vmem:[%s132 + $0x20] sm:$0xff]
    %v138 = vld [vmem:[%s132 + $0x28] sm:$0xff]
    %v139 = vld [vmem:[%s132 + $0x30] sm:$0xff]
    %v140 = vld [vmem:[%s132 + $0x38] sm:$0xff]
    %v141 = vld [vmem:[%s132 + $0x40] sm:$0xff]
    %v142 = vld [vmem:[%s132 + $0x48] sm:$0xff]
    %v143 = vld [vmem:[%s132 + $0x50] sm:$0xff]
    %v144 = vld [vmem:[%s132 + $0x58] sm:$0xff]
    %v145 = vld [vmem:[%s132 + $0x60] sm:$0xff]
    %v146 = vld [vmem:[%s132 + $0x68] sm:$0xff]
    %v147 = vld [vmem:[%s132 + $0x70] sm:$0xff]
    %v148 = vld [vmem:[%s132 + $0x78] sm:$0xff]
    %v149 = vlaneseq
    %v150 = vshrl.u32 %v149, 7
    %v151 = vsub.s32 1, %v150
    %v152 = vrot.slane %v40, %v151
    %153 = vmatprep.subr.mxu0 0.0
    %154 = vmatpush1.msra.mxu0 %v133
    %155 = vmatprep.subr.mxu0 0.0
    %156 = vmatpush1.msra.mxu0 %v134
    %157 = vmatprep.subr.mxu0 0.0
    %158 = vmatpush1.msra.mxu0 %v135
    %159 = vmatprep.subr.mxu0 0.0
    %160 = vmatpush1.msra.mxu0 %v136
    %161 = vmatprep.subr.mxu0 0.0
    %162 = vmatpush1.msra.mxu0 %v137
    %163 = vmatprep.subr.mxu0 0.0
    %164 = vmatpush1.msra.mxu0 %v138
    %165 = vmatprep.subr.mxu0 0.0
    %166 = vmatpush1.msra.mxu0 %v139
    %167 = vmatprep.subr.mxu0 0.0
    %168 = vmatpush1.msra.mxu0 %v140
    %169 = vmatprep.subr.mxu0 0.0
    %170 = vmatpush1.msra.mxu0 %v141
    %171 = vmatprep.subr.mxu0 0.0
    %172 = vmatpush1.msra.mxu0 %v142
    %173 = vmatprep.subr.mxu0 0.0
    %174 = vmatpush1.msra.mxu0 %v143
    %175 = vmatprep.subr.mxu0 0.0
    %176 = vmatpush1.msra.mxu0 %v144
    %177 = vmatprep.subr.mxu0 0.0
    %178 = vmatpush1.msra.mxu0 %v145
    %179 = vmatprep.subr.mxu0 0.0
    %180 = vmatpush1.msra.mxu0 %v146
    %181 = vmatprep.subr.mxu0 0.0
    %182 = vmatpush1.msra.mxu0 %v147
    %183 = vmatprep.subr.mxu0 0.0
    %184 = vmatpush1.msra.mxu0 %v148
    %185 = vmatprep.subr.mxu0 0.0
    %186 = vmatpush1.msra.mxu0 0.0
    %187 = vmatprep.subr.mxu0 0.0
    %188 = vmatpush1.msra.mxu0 0.0
    %189 = vmatprep.subr.mxu0 0.0
    %190 = vmatpush1.msra.mxu0 0.0
    %191 = vmatprep.subr.mxu0 0.0
    %192 = vmatpush1.msra.mxu0 0.0
    %193 = vmatprep.subr.mxu0 0.0
    %194 = vmatpush1.msra.mxu0 0.0
    %195 = vmatprep.subr.mxu0 0.0
    %196 = vmatpush1.msra.mxu0 0.0
    %197 = vmatprep.subr.mxu0 0.0
    %198 = vmatpush1.msra.mxu0 0.0
    %199 = vmatprep.subr.mxu0 0.0
    %200 = vmatpush1.msra.mxu0 0.0
    %201 = vmatprep.subr.mxu0 0.0
    %202 = vmatpush1.msra.mxu0 0.0
    %203 = vmatprep.subr.mxu0 0.0
    %204 = vmatpush1.msra.mxu0 0.0
    %205 = vmatprep.subr.mxu0 0.0
    %206 = vmatpush1.msra.mxu0 0.0
    %207 = vmatprep.subr.mxu0 0.0
    %208 = vmatpush1.msra.mxu0 0.0
    %209 = vmatprep.subr.mxu0 0.0
    %210 = vmatpush1.msra.mxu0 0.0
    %211 = vmatprep.subr.mxu0 0.0
    %212 = vmatpush1.msra.mxu0 0.0
    %213 = vmatprep.subr.mxu0 0.0
    %214 = vmatpush1.msra.mxu0 0.0
    %215 = vmatprep.subr.mxu0 0.0
    %216 = vmatpush1.msra.mxu0 0.0
    %217 = vmatprep.mubr.f32.mxu0 0.0
    %218 = vmatmul.mubr.f32.gmra.mrb[0].mxu0 %v131
    %v219 = vpop.f32.mrb[0].mxu0
    %v220 = vadd.f32 %v152, %v219
    %v221 = vpop.f32.mrb[0].mxu0
    %222 = vdwg.mxu0
    %v223 = vmax.f32 %v220, 0.0
    %s224 = scalar_lea.vmem [#allocation5], 256
    %v225 = vld [vmem:[%s224] sm:$0xff]
    %v226 = vld [vmem:[%s224 + $0x8] sm:$0xff]
    %v227 = vld [vmem:[%s224 + $0x10] sm:$0xff]
    %v228 = vld [vmem:[%s224 + $0x18] sm:$0xff]
    %v229 = vld [vmem:[%s224 + $0x20] sm:$0xff]
    %v230 = vld [vmem:[%s224 + $0x28] sm:$0xff]
    %v231 = vld [vmem:[%s224 + $0x30] sm:$0xff]
    %v232 = vld [vmem:[%s224 + $0x38] sm:$0xff]
    %v233 = vld [vmem:[%s224 + $0x40] sm:$0xff]
    %v234 = vld [vmem:[%s224 + $0x48] sm:$0xff]
    %v235 = vld [vmem:[%s224 + $0x50] sm:$0xff]
    %v236 = vld [vmem:[%s224 + $0x58] sm:$0xff]
    %v237 = vld [vmem:[%s224 + $0x60] sm:$0xff]
    %v238 = vld [vmem:[%s224 + $0x68] sm:$0xff]
    %v239 = vld [vmem:[%s224 + $0x70] sm:$0xff]
    %v240 = vld [vmem:[%s224 + $0x78] sm:$0xff]
    %v241 = vlaneseq
    %v242 = vshrl.u32 %v241, 7
    %v243 = vsub.s32 2, %v242
    %v244 = vrot.slane %v40, %v243
    %245 = vmatprep.subr.mxu0 0.0
    %246 = vmatpush1.msra.mxu0 %v225
    %247 = vmatprep.subr.mxu0 0.0
    %248 = vmatpush1.msra.mxu0 %v226
    %249 = vmatprep.subr.mxu0 0.0
    %250 = vmatpush1.msra.mxu0 %v227
    %251 = vmatprep.subr.mxu0 0.0
    %252 = vmatpush1.msra.mxu0 %v228
    %253 = vmatprep.subr.mxu0 0.0
    %254 = vmatpush1.msra.mxu0 %v229
    %255 = vmatprep.subr.mxu0 0.0
    %256 = vmatpush1.msra.mxu0 %v230
    %257 = vmatprep.subr.mxu0 0.0
    %258 = vmatpush1.msra.mxu0 %v231
    %259 = vmatprep.subr.mxu0 0.0
    %260 = vmatpush1.msra.mxu0 %v232
    %261 = vmatprep.subr.mxu0 0.0
    %262 = vmatpush1.msra.mxu0 %v233
    %263 = vmatprep.subr.mxu0 0.0
    %264 = vmatpush1.msra.mxu0 %v234
    %265 = vmatprep.subr.mxu0 0.0
    %266 = vmatpush1.msra.mxu0 %v235
    %267 = vmatprep.subr.mxu0 0.0
    %268 = vmatpush1.msra.mxu0 %v236
    %269 = vmatprep.subr.mxu0 0.0
    %270 = vmatpush1.msra.mxu0 %v237
    %271 = vmatprep.subr.mxu0 0.0
    %272 = vmatpush1.msra.mxu0 %v238
    %273 = vmatprep.subr.mxu0 0.0
    %274 = vmatpush1.msra.mxu0 %v239
    %275 = vmatprep.subr.mxu0 0.0
    %276 = vmatpush1.msra.mxu0 %v240
    %277 = vmatprep.subr.mxu0 0.0
    %278 = vmatpush1.msra.mxu0 0.0
    %279 = vmatprep.subr.mxu0 0.0
    %280 = vmatpush1.msra.mxu0 0.0
    %281 = vmatprep.subr.mxu0 0.0
    %282 = vmatpush1.msra.mxu0 0.0
    %283 = vmatprep.subr.mxu0 0.0
    %284 = vmatpush1.msra.mxu0 0.0
    %285 = vmatprep.subr.mxu0 0.0
    %286 = vmatpush1.msra.mxu0 0.0
    %287 = vmatprep.subr.mxu0 0.0
    %288 = vmatpush1.msra.mxu0 0.0
    %289 = vmatprep.subr.mxu0 0.0
    %290 = vmatpush1.msra.mxu0 0.0
    %291 = vmatprep.subr.mxu0 0.0
    %292 = vmatpush1.msra.mxu0 0.0
    %293 = vmatprep.subr.mxu0 0.0
    %294 = vmatpush1.msra.mxu0 0.0
    %295 = vmatprep.subr.mxu0 0.0
    %296 = vmatpush1.msra.mxu0 0.0
    %297 = vmatprep.subr.mxu0 0.0
    %298 = vmatpush1.msra.mxu0 0.0
    %299 = vmatprep.subr.mxu0 0.0
    %300 = vmatpush1.msra.mxu0 0.0
    %301 = vmatprep.subr.mxu0 0.0
    %302 = vmatpush1.msra.mxu0 0.0
    %303 = vmatprep.subr.mxu0 0.0
    %304 = vmatpush1.msra.mxu0 0.0
    %305 = vmatprep.subr.mxu0 0.0
    %306 = vmatpush1.msra.mxu0 0.0
    %307 = vmatprep.subr.mxu0 0.0
    %308 = vmatpush1.msra.mxu0 0.0
    %309 = vmatprep.mubr.f32.mxu0 0.0
    %310 = vmatmul.mubr.f32.gmra.mrb[0].mxu0 %v223
    %v311 = vpop.f32.mrb[0].mxu0
    %v312 = vadd.f32 %v244, %v311
    %v313 = vpop.f32.mrb[0].mxu0
    %314 = vdwg.mxu0
    %315 = vst [vmem:[#allocation7] sm:$0xff] %v312
    // Predicated region
    $region18: #{tpu_custom_call.1} parent=1 // pred_check
      _
    $region19: #{tpu_custom_call.1} parent=1 // pred_check_branch
      %317 = sbr.rel (0) target = $region21
    $region20: #{tpu_custom_call.1} parent=1 // pred_region
      %s319 = ssub.s32 128, 128
      %320 = vsyncadd [#allocation4], %s319
      %s322 = sshll.u32 [#allocation7], 4
      %s323 = int_to_ptr.vmem [resolvable:$true] %s322
      %325 = dma.vmem_to_hbm [thread:$0]  %s323, 128, %s2, [#allocation4]
    $region21: #{tpu_custom_call.1} parent=1 // pred_fallthru
      _
    // Predicated region
    $region22: #{tpu_custom_call.1} parent=1 // pred_check
      _
    $region23: #{tpu_custom_call.1} parent=1 // pred_check_branch
      %327 = sbr.rel (0) target = $region25
    $region24: #{tpu_custom_call.1} parent=1 // pred_region
      %328 = dma.done [#allocation4], 128
    $region25: #{tpu_custom_call.1} parent=1 // pred_fallthru
      _
    %329 = vsyncpa [#allocation3], 1
    %330 = vsyncpa [#allocation6], 1
    %331 = vsyncpa [#allocation4], 1

</llo_original>
